<compile_context>
chip_gen: v6e
topology: v6e:2x2x1
jax: 0.10.0
libtpu: 0.0.40
codegen_flags: <defaults>
</compile_context>

<pallas_src>
import numpy as np
import jax
import jax.numpy as jnp
from jax.experimental import pallas as pl
from jax.experimental.pallas import tpu as pltpu


# ----------------------------------------------------------------------------
# Fused kernel factory: encoder -> VQ -> decoder for one tile of tokens.
# ----------------------------------------------------------------------------

def _make_fused_kernel(c, d, k, tile, n_valid, n_pad):
    needs_mask = n_pad != n_valid

    def kernel(x_ref, wcat_ref, b_enc_ref, e2p_ref, w2t_ref, b_dec_ref,
               recon_ref, sse_ref, counts_ref):
        """One tile of `tile` tokens, tokens on the lane (last) axis.

        x_ref     : (C, T)    input tokens (channels x tokens)
        wcat_ref  : (D+K, C)  [w_enc.T ; -2*emb@w_enc.T]          resident
        b_enc_ref : (D, 1)    encoder bias (column)               resident
        e2p_ref   : (K, 1)    |e_k|^2 - 2*e_k.b_enc               resident
        w2t_ref   : (C, K)    (emb @ w_dec).T  (decoder folded)   resident
        b_dec_ref : (C, 1)    decoder bias (column)               resident
        recon_ref : (C, T)    reconstruction tile
        sse_ref   : (1,1,1)   per-tile sum of |quant - z|^2
        counts_ref: (1,K,1)   per-tile codebook-usage counts
        """
        x = x_ref[...]                                            # (C, T)

        # Encoder + distance cross-term in ONE MXU pass:
        #   mixed[:D] = w_enc.T @ x              (z before bias)
        #   mixed[D:] = -2 * emb @ w_enc.T @ x   (distance cross-term)
        mixed = jnp.dot(wcat_ref[...], x,
                        preferred_element_type=jnp.float32)       # (D+K, T)
        z = mixed[:d, :] + b_enc_ref[...]                         # (D, T)
        dist = mixed[d:, :] + e2p_ref[...]                        # (K, T) = |e|^2 - 2 z.e

        # Nearest codebook entry (first-occurrence argmin, matches torch.argmin);
        # the per-token |z|^2 term is constant across K and dropped.
        row = jax.lax.broadcasted_iota(jnp.int32, (k, tile), 0)
        dmin = jnp.min(dist, axis=0, keepdims=True)               # (1, T)
        idx = jnp.min(jnp.where(dist == dmin, row, k),
                      axis=0, keepdims=True)                      # (1, T)
        onehot = (row == idx).astype(jnp.float32)                 # (K, T)

        # Valid-token masks (only materialized when the last tile is padded).
        if needs_mask:
            base = pl.program_id(0) * tile
            gcol_r = base + jax.lax.broadcasted_iota(jnp.int32, (1, tile), 1)
            mask_row = (gcol_r < n_valid).astype(jnp.float32)     # (1, T)
            gcol_c = base + jax.lax.broadcasted_iota(jnp.int32, (tile, 1), 0)
            mask_col = (gcol_c < n_valid).astype(jnp.float32)     # (T, 1)
        else:
            mask_col = jnp.ones((tile, 1), jnp.float32)

        # Per-tile SSE partial: |quant - z|^2 == dist[idx] + |z|^2 == dmin + |z|^2.
        # The D-reduction of z^2 rides the otherwise idle MXU slot.
        zsq = jnp.dot(jnp.ones((1, d), jnp.float32), z * z,
                      preferred_element_type=jnp.float32)         # (1, T)
        per_tok = dmin + zsq
        if needs_mask:
            per_tok = per_tok * mask_row
        sse_ref[...] = jnp.full((1, 1, 1), jnp.sum(per_tok), jnp.float32)

        # Per-tile codebook-usage counts via MXU (padded tokens masked out).
        counts = jnp.dot(onehot, mask_col,
                         preferred_element_type=jnp.float32)      # (K, 1)
        counts_ref[...] = counts.reshape(1, k, 1)

        # Decoder (straight-through forward value): onehot selects rows of
        # the pre-folded (emb @ w_dec); lane-dense (C, T) store.
        # TODO(synk): backward pass (straight-through estimator and separate
        #             e/q latent-loss gradients) is not implemented; this kernel
        #             reproduces forward values only.
        recon_ref[...] = (jnp.dot(w2t_ref[...], onehot,
                                  preferred_element_type=jnp.float32)
                          + b_dec_ref[...])                       # (C, T)

    return kernel


# ----------------------------------------------------------------------------
# Wrapper
# ----------------------------------------------------------------------------

def _round_up(x, m):
    return ((x + m - 1) // m) * m


def _choose_tile(n, cap):
    """Lane-dense tile (multiple of 128 tokens), >= 2 grid steps when n allows."""
    cap = max(128, (int(cap) // 128) * 128)
    return min(cap, _round_up(max(1, -(-n // 2)), 128))


def vqvae_forward(params, x_nchw, commitment_cost, tile_cap=4096):
    w_enc = params["w_enc"]          # (C, D)
    b_enc = params["b_enc"]          # (1, D)
    w_dec = params["w_dec"]          # (D, C)
    b_dec = params["b_dec"]          # (1, C)
    emb = params["embedding"]        # (K, D)

    b, c, h, w = x_nchw.shape
    k, d = emb.shape
    n = b * h * w

    hi = jax.lax.Precision.HIGHEST   # tiny precomputes: keep them exact f32

    # Fold encoder / decoder weights into the codebook (tiny XLA precomputes).
    w1t = -2.0 * jnp.dot(emb, w_enc.T, precision=hi)              # (K, C)
    wcat = jnp.concatenate([w_enc.T, w1t], axis=0)                # (D+K, C)
    b_enc_col = b_enc.T                                           # (D, 1)
    e2p = (jnp.sum(emb * emb, axis=1, keepdims=True)
           - 2.0 * jnp.dot(emb, b_enc.T, precision=hi))           # (K, 1)
    w2t = jnp.dot(emb, w_dec, precision=hi).T                     # (C, K)
    b_dec_col = b_dec.T                                           # (C, 1)

    # NCHW -> (C, N): tokens on the lane (last) axis.
    x_cn = jnp.transpose(x_nchw, (1, 0, 2, 3)).reshape(c, n).astype(jnp.float32)

    tile = _choose_tile(n, tile_cap)
    num_tiles = -(-n // tile)
    n_pad = num_tiles * tile
    if n_pad != n:
        x_cn = jnp.pad(x_cn, ((0, 0), (0, n_pad - n)))

    kernel = _make_fused_kernel(c, d, k, tile, n, n_pad)

    recon, sse, counts = pl.pallas_call(
        kernel,
        grid=(num_tiles,),
        in_specs=[
            pl.BlockSpec((c, tile), lambda i: (0, i)),        # x tokens (tiled)
            pl.BlockSpec((d + k, c), lambda i: (0, 0)),       # [w_enc.T ; -2 emb w_enc.T]
            pl.BlockSpec((d, 1), lambda i: (0, 0)),           # b_enc column
            pl.BlockSpec((k, 1), lambda i: (0, 0)),           # |e|^2 - 2 e.b_enc
            pl.BlockSpec((c, k), lambda i: (0, 0)),           # (emb @ w_dec).T
            pl.BlockSpec((c, 1), lambda i: (0, 0)),           # b_dec column
        ],
        out_specs=[
            pl.BlockSpec((c, tile), lambda i: (0, i)),        # recon tokens
            pl.BlockSpec((1, 1, 1), lambda i: (i, 0, 0)),     # per-tile SSE
            pl.BlockSpec((1, k, 1), lambda i: (i, 0, 0)),     # per-tile counts
        ],
        out_shape=(
            jax.ShapeDtypeStruct((c, n_pad), jnp.float32),
            jax.ShapeDtypeStruct((num_tiles, 1, 1), jnp.float32),
            jax.ShapeDtypeStruct((num_tiles, k, 1), jnp.float32),
        ),
        compiler_params=pltpu.CompilerParams(
            dimension_semantics=("parallel",),
            vmem_limit_bytes=48 * 1024 * 1024,
        ),
    )(x_cn, wcat, b_enc_col, e2p, w2t, b_dec_col)

    # Finalize the global reductions in XLA (inputs are tiny).
    mse = jnp.sum(sse) / (n * d)
    loss = (1.0 + commitment_cost) * mse           # forward: e_loss == q_loss
    avg_probs = jnp.sum(counts, axis=(0, 2)) / n   # (K,)
    perplexity = jnp.exp(-jnp.sum(avg_probs * jnp.log(avg_probs + 1e-10)))

    # (C, N) -> NCHW (drop padded tokens).
    x_recon = jnp.transpose(recon[:, :n].reshape(c, b, h, w), (1, 0, 2, 3))
    return loss, x_recon, perplexity


_vqvae_forward_jit = jax.jit(vqvae_forward, static_argnames=("tile_cap",))


# ----------------------------------------------------------------------------
# VQVAE model (params + forward).  The abstract nn.Module encoder/decoder of
# the PyTorch class are realized as deterministic pointwise (1x1) convs.
# ----------------------------------------------------------------------------

class VQVAEPallas:
    def __init__(self, in_channels, num_embeddings, embedding_dim,
                 commitment_cost, key, tile_cap=4096):
        self.in_channels = in_channels
        self.num_embeddings = num_embeddings
        self.embedding_dim = embedding_dim
        self.commitment_cost = float(commitment_cost)
        self.tile_cap = int(tile_cap)

        k_enc, k_dec, k_emb = jax.random.split(key, 3)
        lim = 1.0 / num_embeddings
        self.params = {
            # encoder: 1x1 conv  C_in -> D
            "w_enc": jax.random.uniform(
                k_enc, (in_channels, embedding_dim), jnp.float32, -0.1, 0.1),
            "b_enc": jnp.zeros((1, embedding_dim), jnp.float32),
            # decoder: 1x1 conv  D -> C_in
            "w_dec": jax.random.uniform(
                k_dec, (embedding_dim, in_channels), jnp.float32, -0.1, 0.1),
            "b_dec": jnp.zeros((1, in_channels), jnp.float32),
            # codebook: uniform(-1/K, 1/K), matching the PyTorch init
            "embedding": jax.random.uniform(
                k_emb, (num_embeddings, embedding_dim), jnp.float32, -lim, lim),
        }

    def __call__(self, x_nchw):
        assert x_nchw.shape[1] == self.in_channels
        return _vqvae_forward_jit(self.params, x_nchw, self.commitment_cost,
                                  tile_cap=self.tile_cap)


# ----------------------------------------------------------------------------
# Pure-numpy float64 reference of the PyTorch forward pass (for validation).
# ----------------------------------------------------------------------------

def _vqvae_forward_ref_np(params, x_nchw, commitment_cost):
    w_enc = np.asarray(params["w_enc"], np.float64)
    b_enc = np.asarray(params["b_enc"], np.float64)
    w_dec = np.asarray(params["w_dec"], np.float64)
    b_dec = np.asarray(params["b_dec"], np.float64)
    emb = np.asarray(params["embedding"], np.float64)

    x = np.asarray(x_nchw, np.float64)
    b, c, h, w = x.shape
    flat = x.transpose(0, 2, 3, 1).reshape(-1, c)           # (N, C)
    z = flat @ w_enc + b_enc                                 # (N, D)
    d2 = ((z * z).sum(1, keepdims=True) + (emb * emb).sum(1)[None, :]
          - 2.0 * z @ emb.T)
    idx = np.argmin(d2, axis=1)
    onehot = np.zeros((z.shape[0], emb.shape[0]), np.float64)
    onehot[np.arange(z.shape[0]), idx] = 1.0
    quant = onehot @ emb
    e_latent = ((quant - z) ** 2).mean()
    loss = (1.0 + commitment_cost) * e_latent
    recon = (quant @ w_dec + b_dec).reshape(b, h, w, c).transpose(0, 3, 1, 2)
    avg = onehot.mean(0)
    perp = np.exp(-(avg * np.log(avg + 1e-10)).sum())
    return float(loss), recon, float(perp)


# ----------------------------------------------------------------------------
# Main
# ----------------------------------------------------------------------------

if __name__ == "__main__":
    key = jax.random.PRNGKey(0)
    k_x1, k_x2, k_params = jax.random.split(key, 3)

    B, C = 2, 4
    NUM_EMBEDDINGS = 64
    EMBEDDING_DIM = 32
    COMMITMENT_COST = 0.25

    model = VQVAEPallas(C, NUM_EMBEDDINGS, EMBEDDING_DIM,
                        COMMITMENT_COST, k_params, tile_cap=4096)

    # Case 1: N=512 -> two lane-dense tiles of 256 tokens (no padding).
    x1 = jax.random.normal(k_x1, (B, C, 16, 16), jnp.float32)
    # Case 2: N=200 -> two tiles of 128 tokens, last tile padded & masked.
    x2 = jax.random.normal(k_x2, (B, C, 10, 10), jnp.float32)

    for x in (x1, x2):
        loss, x_recon, perplexity = model(x)
        jax.block_until_ready((loss, x_recon, perplexity))

        assert x_recon.shape == x.shape
        assert loss.shape == () and perplexity.shape == ()
        assert bool(jnp.isfinite(loss)) and bool(jnp.isfinite(perplexity))

        loss_r, recon_r, perp_r = _vqvae_forward_ref_np(
            model.params, np.asarray(x), COMMITMENT_COST)

        recon_np = np.asarray(x_recon, np.float64)
        tol = 2e-4 + 2e-3 * np.abs(recon_r)
        # allow a vanishing fraction of mismatches from near-tie argmin flips
        assert np.mean(np.abs(recon_np - recon_r) > tol) < 0.005
        assert abs(float(loss) - loss_r) <= 1e-3 * max(abs(loss_r), 1e-6) + 1e-6
        assert abs(float(perplexity) - perp_r) <= 2e-2 * abs(perp_r) + 1e-3

    print("KERNEL_OK")
</pallas_src>

<mosaic_0001>
module attributes {stable_mosaic.version = 11 : i64} {
  func.func @kernel(%arg0: i32, %arg1: memref<4x256xf32, #tpu.memory_space<vmem>>, %arg2: memref<96x4xf32, #tpu.memory_space<vmem>>, %arg3: memref<32x1xf32, #tpu.memory_space<vmem>>, %arg4: memref<64x1xf32, #tpu.memory_space<vmem>>, %arg5: memref<4x64xf32, #tpu.memory_space<vmem>>, %arg6: memref<4x1xf32, #tpu.memory_space<vmem>>, %arg7: memref<4x256xf32, #tpu.memory_space<vmem>>, %arg8: memref<1x1x1xf32, #tpu.memory_space<vmem>>, %arg9: memref<1x64x1xf32, #tpu.memory_space<vmem>>) attributes {dimension_semantics = [#tpu.dimension_semantics<parallel>], iteration_bounds = array<i64: 2>, scalar_prefetch = 0 : i64, scratch_operands = 0 : i64, tpu.core_type = #tpu.core_type<tc>, window_params = [{transform_indices = @transform_0, window_bounds = array<i64: 4, 256>}, {pipeline_mode = #tpu.pipeline_mode<synchronous>, transform_indices = @transform_1, window_bounds = array<i64: 96, 4>}, {pipeline_mode = #tpu.pipeline_mode<synchronous>, transform_indices = @transform_2, window_bounds = array<i64: 32, 1>}, {pipeline_mode = #tpu.pipeline_mode<synchronous>, transform_indices = @transform_3, window_bounds = array<i64: 64, 1>}, {pipeline_mode = #tpu.pipeline_mode<synchronous>, transform_indices = @transform_4, window_bounds = array<i64: 4, 64>}, {pipeline_mode = #tpu.pipeline_mode<synchronous>, transform_indices = @transform_5, window_bounds = array<i64: 4, 1>}, {transform_indices = @transform_6, window_bounds = array<i64: 4, 256>}, {transform_indices = @transform_7, window_bounds = array<i64: 1, 1, 1>}, {transform_indices = @transform_8, window_bounds = array<i64: 1, 64, 1>}]} {
    %c0 = arith.constant 0 : index
    %c0_0 = arith.constant 0 : index
    %0 = vector.load %arg1[%c0, %c0_0] : memref<4x256xf32, #tpu.memory_space<vmem>>, vector<4x256xf32>
    %c0_1 = arith.constant 0 : index
    %c0_2 = arith.constant 0 : index
    %1 = vector.load %arg2[%c0_1, %c0_2] : memref<96x4xf32, #tpu.memory_space<vmem>>, vector<96x4xf32>
    %cst = arith.constant dense<0.000000e+00> : vector<96x256xf32>
    %2 = tpu.matmul %1, %0, %cst {dimension_numbers = #tpu.dot_dimension_numbers<[1], [0], [0], [1], [0, 0, 1, 1], [], []>} : vector<96x4xf32>, vector<4x256xf32>, vector<96x256xf32> -> vector<96x256xf32>
    %3 = vector.extract_strided_slice %2 {offsets = [0, 0], sizes = [32, 256], strides = [1, 1]} : vector<96x256xf32> to vector<32x256xf32>
    %c0_3 = arith.constant 0 : index
    %c0_4 = arith.constant 0 : index
    %4 = vector.load %arg3[%c0_3, %c0_4] : memref<32x1xf32, #tpu.memory_space<vmem>>, vector<32x1xf32>
    %5 = vector.broadcast %4 : vector<32x1xf32> to vector<32x256xf32>
    %6 = arith.addf %3, %5 : vector<32x256xf32>
    %7 = vector.extract_strided_slice %2 {offsets = [32, 0], sizes = [64, 256], strides = [1, 1]} : vector<96x256xf32> to vector<64x256xf32>
    %c0_5 = arith.constant 0 : index
    %c0_6 = arith.constant 0 : index
    %8 = vector.load %arg4[%c0_5, %c0_6] : memref<64x1xf32, #tpu.memory_space<vmem>>, vector<64x1xf32>
    %9 = vector.broadcast %8 : vector<64x1xf32> to vector<64x256xf32>
    %10 = arith.addf %7, %9 : vector<64x256xf32>
    %11 = tpu.iota {dimensions = array<i32: 0>} : vector<64x256xi32>
    %cst_7 = arith.constant dense<0x7F800000> : vector<256xf32>
    %12 = vector.multi_reduction <minimumf>, %10, %cst_7 [0] : vector<64x256xf32> to vector<256xf32>
    %13 = vector.shape_cast %12 : vector<256xf32> to vector<1x256xf32>
    %14 = vector.broadcast %13 : vector<1x256xf32> to vector<64x256xf32>
    %15 = arith.cmpf oeq, %10, %14 : vector<64x256xf32>
    %c64_i32 = arith.constant 64 : i32
    %16 = vector.broadcast %c64_i32 : i32 to vector<64x256xi32>
    %17 = arith.select %15, %11, %16 : vector<64x256xi1>, vector<64x256xi32>
    %cst_8 = arith.constant dense<2147483647> : vector<256xi32>
    %18 = vector.multi_reduction <minsi>, %17, %cst_8 [0] : vector<64x256xi32> to vector<256xi32>
    %19 = vector.shape_cast %18 : vector<256xi32> to vector<1x256xi32>
    %20 = vector.broadcast %19 : vector<1x256xi32> to vector<64x256xi32>
    %21 = arith.cmpi eq, %11, %20 : vector<64x256xi32>
    %22 = arith.extui %21 : vector<64x256xi1> to vector<64x256xi32>
    %23 = arith.sitofp %22 : vector<64x256xi32> to vector<64x256xf32>
    %cst_9 = arith.constant 1.000000e+00 : f32
    %24 = vector.broadcast %cst_9 : f32 to vector<256x1xf32>
    %cst_10 = arith.constant 1.000000e+00 : f32
    %25 = vector.broadcast %cst_10 : f32 to vector<1x32xf32>
    %26 = arith.mulf %6, %6 : vector<32x256xf32>
    %cst_11 = arith.constant dense<0.000000e+00> : vector<1x256xf32>
    %27 = tpu.matmul %25, %26, %cst_11 {dimension_numbers = #tpu.dot_dimension_numbers<[1], [0], [0], [1], [0, 0, 1, 1], [], []>} : vector<1x32xf32>, vector<32x256xf32>, vector<1x256xf32> -> vector<1x256xf32>
    %28 = arith.addf %13, %27 : vector<1x256xf32>
    %29 = vector.shape_cast %28 : vector<1x256xf32> to vector<1x1x256xf32>
    %cst_12 = arith.constant dense<0.000000e+00> : vector<1xf32>
    %30 = vector.multi_reduction <add>, %29, %cst_12 [1, 2] : vector<1x1x256xf32> to vector<1xf32>
    %31 = vector.shape_cast %30 : vector<1xf32> to vector<1x1x1xf32>
    %32 = vector.extract %31[0, 0, 0] : f32 from vector<1x1x1xf32>
    %33 = vector.broadcast %32 : f32 to vector<1x1x1xf32>
    %c0_13 = arith.constant 0 : index
    %c0_14 = arith.constant 0 : index
    %c0_15 = arith.constant 0 : index
    %34 = vector.load %arg8[%c0_13, %c0_14, %c0_15] : memref<1x1x1xf32, #tpu.memory_space<vmem>>, vector<1x1x1xf32>
    tpu.vector_store %arg8[%c0_13, %c0_14, %c0_15], %33 {strides = array<i32>} : memref<1x1x1xf32, #tpu.memory_space<vmem>>, vector<1x1x1xf32>,
    %cst_16 = arith.constant dense<0.000000e+00> : vector<64x1xf32>
    %35 = tpu.matmul %23, %24, %cst_16 {dimension_numbers = #tpu.dot_dimension_numbers<[1], [0], [0], [1], [0, 0, 1, 1], [], []>} : vector<64x256xf32>, vector<256x1xf32>, vector<64x1xf32> -> vector<64x1xf32>
    %36 = vector.shape_cast %35 : vector<64x1xf32> to vector<1x64x1xf32>
    %c0_17 = arith.constant 0 : index
    %c0_18 = arith.constant 0 : index
    %c0_19 = arith.constant 0 : index
    %37 = vector.load %arg9[%c0_17, %c0_18, %c0_19] : memref<1x64x1xf32, #tpu.memory_space<vmem>>, vector<1x64x1xf32>
    tpu.vector_store %arg9[%c0_17, %c0_18, %c0_19], %36 {strides = array<i32>} : memref<1x64x1xf32, #tpu.memory_space<vmem>>, vector<1x64x1xf32>,
    %c0_20 = arith.constant 0 : index
    %c0_21 = arith.constant 0 : index
    %38 = vector.load %arg5[%c0_20, %c0_21] : memref<4x64xf32, #tpu.memory_space<vmem>>, vector<4x64xf32>
    %cst_22 = arith.constant dense<0.000000e+00> : vector<4x256xf32>
    %39 = tpu.matmul %38, %23, %cst_22 {dimension_numbers = #tpu.dot_dimension_numbers<[1], [0], [0], [1], [0, 0, 1, 1], [], []>} : vector<4x64xf32>, vector<64x256xf32>, vector<4x256xf32> -> vector<4x256xf32>
    %c0_23 = arith.constant 0 : index
    %c0_24 = arith.constant 0 : index
    %40 = vector.load %arg6[%c0_23, %c0_24] : memref<4x1xf32, #tpu.memory_space<vmem>>, vector<4x1xf32>
    %41 = vector.broadcast %40 : vector<4x1xf32> to vector<4x256xf32>
    %42 = arith.addf %39, %41 : vector<4x256xf32>
    %c0_25 = arith.constant 0 : index
    %c0_26 = arith.constant 0 : index
    %43 = vector.load %arg7[%c0_25, %c0_26] : memref<4x256xf32, #tpu.memory_space<vmem>>, vector<4x256xf32>
    tpu.vector_store %arg7[%c0_25, %c0_26], %42 {strides = array<i32>} : memref<4x256xf32, #tpu.memory_space<vmem>>, vector<4x256xf32>,
    return
  }
  func.func @transform_0(%arg0: i32) -> (i32, i32) {
    %c0_i32 = arith.constant 0 : i32
    %c0_i32_0 = arith.constant 0 : i32
    return %c0_i32, %arg0 : i32, i32
  }
  func.func @transform_1(%arg0: i32) -> (i32, i32) {
    %c0_i32 = arith.constant 0 : i32
    %c0_i32_0 = arith.constant 0 : i32
    %c0_i32_1 = arith.constant 0 : i32
    return %c0_i32, %c0_i32_0 : i32, i32
  }
  func.func @transform_2(%arg0: i32) -> (i32, i32) {
    %c0_i32 = arith.constant 0 : i32
    %c0_i32_0 = arith.constant 0 : i32
    %c0_i32_1 = arith.constant 0 : i32
    return %c0_i32, %c0_i32_0 : i32, i32
  }
  func.func @transform_3(%arg0: i32) -> (i32, i32) {
    %c0_i32 = arith.constant 0 : i32
    %c0_i32_0 = arith.constant 0 : i32
    %c0_i32_1 = arith.constant 0 : i32
    return %c0_i32, %c0_i32_0 : i32, i32
  }
  func.func @transform_4(%arg0: i32) -> (i32, i32) {
    %c0_i32 = arith.constant 0 : i32
    %c0_i32_0 = arith.constant 0 : i32
    %c0_i32_1 = arith.constant 0 : i32
    return %c0_i32, %c0_i32_0 : i32, i32
  }
  func.func @transform_5(%arg0: i32) -> (i32, i32) {
    %c0_i32 = arith.constant 0 : i32
    %c0_i32_0 = arith.constant 0 : i32
    %c0_i32_1 = arith.constant 0 : i32
    return %c0_i32, %c0_i32_0 : i32, i32
  }
  func.func @transform_6(%arg0: i32) -> (i32, i32) {
    %c0_i32 = arith.constant 0 : i32
    %c0_i32_0 = arith.constant 0 : i32
    return %c0_i32, %arg0 : i32, i32
  }
  func.func @transform_7(%arg0: i32) -> (i32, i32, i32) {
    %c0_i32 = arith.constant 0 : i32
    %c0_i32_0 = arith.constant 0 : i32
    %c0_i32_1 = arith.constant 0 : i32
    return %arg0, %c0_i32, %c0_i32_0 : i32, i32, i32
  }
  func.func @transform_8(%arg0: i32) -> (i32, i32, i32) {
    %c0_i32 = arith.constant 0 : i32
    %c0_i32_0 = arith.constant 0 : i32
    %c0_i32_1 = arith.constant 0 : i32
    return %arg0, %c0_i32, %c0_i32_0 : i32, i32, i32
  }
}

</mosaic_0001>

<llo_original>
// kernel: vqvae_forward.1
$region0: #{vqvae_forward.1}
  #allocation0 [shape = 'u32[]', space=smem, size = 0x4, offset = 0x4, fixed_abs, tag = 'smem constant byte address 0x4 - core index']
  #allocation1 [shape = 'u32[144,128]{1,0:T(1,128)}', space=vmem, size = 0x12000, scoped, tag = 'internal scratch']
  %s0 = inlined_call_operand.vmem [shape: f32[4,512], index: 0, kind: input, shape index: {}]
  %s1 = inlined_call_operand.vmem [shape: f32[96,4], index: 1, kind: input, shape index: {}]
  %s2 = inlined_call_operand.vmem [shape: f32[32,1], index: 2, kind: input, shape index: {}]
  %s3 = inlined_call_operand.vmem [shape: f32[64,1], index: 3, kind: input, shape index: {}]
  %s4 = inlined_call_operand.vmem [shape: f32[4,64], index: 4, kind: input, shape index: {}]
  %s5 = inlined_call_operand.vmem [shape: f32[4,1], index: 5, kind: input, shape index: {}]
  %s6 = inlined_call_operand.vmem [shape: f32[4,512], index: 6, kind: output, shape index: {0}]
  %s7 = inlined_call_operand.vmem [shape: f32[2,1,1], index: 7, kind: output, shape index: {1}]
  %s8 = inlined_call_operand.vmem [shape: f32[2,64,1], index: 8, kind: output, shape index: {2}]
  %9 = xla_tuple %s6, %s7, %s8
  %s10 = sld [smem:[#allocation0]]
  $region73: #{vqvae_forward.1} parent=0
    _
  %s12 = ssub.s32 1, %s10
  %s13 = scalar_select 0, %s12, %s10
  loop: start=0, step=1, limit=4
  $region2: #{vqvae_forward.1} parent=0 // loop_pre_header
    _
  $region3: #{vqvae_forward.1} parent=0 // loop_header
    %s15 = sphi 0, %s19
    %p16 = scmp.ge.s32.totalorder %s15, 4
    %s25 = sphi 0, %s27
    %s28 = sphi 0, %s25
    %s29 = sphi 0, %s28
    %s45 = sphi 0, %s29
    %s49 = sphi 0, %s49
    %s51 = sphi 0, %s49
    %s52 = sphi 0, %s51
    %s66 = sphi 0, %s52
    %s70 = sphi 0, %s70
    %s72 = sphi 0, %s70
    %s73 = sphi 0, %s72
    %s87 = sphi 0, %s73
    %s91 = sphi 0, %s91
    %s93 = sphi 0, %s91
    %s94 = sphi 0, %s93
    %s108 = sphi 0, %s94
    %s112 = sphi 0, %s112
    %s114 = sphi 0, %s112
    %s115 = sphi 0, %s114
    %s129 = sphi 0, %s115
    %s133 = sphi 0, %s133
    %s135 = sphi 0, %s133
    %s136 = sphi 0, %s135
    %s150 = sphi 0, %s136
    %s156 = sphi 0, %s158
    %s159 = sphi 0, %s156
    %s160 = sphi 0, %s159
    %s176 = sphi 0, %s160
    %s182 = sphi 0, %s184
    %s185 = sphi 0, %s182
    %s186 = sphi 0, %s185
    %s202 = sphi 0, %s186
    %s208 = sphi 0, %s210
    %s211 = sphi 0, %s208
    %s212 = sphi 0, %s211
    %s228 = sphi 0, %s212
  $region4: #{vqvae_forward.1} parent=0 // loop_header_branch
    %18 = sbr.rel (%p16) target = $region8
  $region5: #{vqvae_forward.1} parent=0 // loop_body
    %s20 = ssub.s32 %s15, 1
    %s21 = ssub.s32 %s15, 2
    %s22 = sadd.s32 %s15, 1
    %s23 = ssub.s32 %s15, %s22
    %p24 = scmp.eq.s32.totalorder %s23, 0
    %s26 = sadd.s32 %s25, 1
    %s27 = scalar_select %p24, %s25, %s26
    %p30 = pneg %p24
    %p31 = scmp.eq.s32.totalorder %s15, 1
    %p32 = por %p30, %p31
    %p33 = scmp.ne.s32.totalorder %s25, %s28
    %p34 = scmp.eq.s32.totalorder %s15, 0
    %p35 = por %p33, %p34
    %p36 = scmp.ne.s32.totalorder %s25, %s28
    %p37 = scmp.eq.s32.totalorder %s20, 1
    %p38 = por %p36, %p37
    %p39 = scmp.ne.s32.totalorder %s28, %s29
    %p40 = scmp.eq.s32.totalorder %s20, 0
    %p41 = por %p39, %p40
    %p42 = scmp.ne.s32.totalorder %s28, %s29
    %p43 = scmp.eq.s32.totalorder %s21, 1
    %p44 = por %p42, %p43
    %p46 = scmp.ne.s32.totalorder %s29, %s45
    %p47 = scmp.eq.s32.totalorder %s21, 0
    %p48 = por %p46, %p47
    %s50 = sadd.s32 %s49, 1
    %p53 = scmp.eq.s32.totalorder %s15, 1
    %p54 = scmp.ne.s32.totalorder %s49, %s51
    %p55 = scmp.eq.s32.totalorder %s15, 0
    %p56 = por %p54, %p55
    %p57 = scmp.ne.s32.totalorder %s49, %s51
    %p58 = scmp.eq.s32.totalorder %s20, 1
    %p59 = por %p57, %p58
    %p60 = scmp.ne.s32.totalorder %s51, %s52
    %p61 = scmp.eq.s32.totalorder %s20, 0
    %p62 = por %p60, %p61
    %p63 = scmp.ne.s32.totalorder %s51, %s52
    %p64 = scmp.eq.s32.totalorder %s21, 1
    %p65 = por %p63, %p64
    %p67 = scmp.ne.s32.totalorder %s52, %s66
    %p68 = scmp.eq.s32.totalorder %s21, 0
    %p69 = por %p67, %p68
    %s71 = sadd.s32 %s70, 1
    %p74 = scmp.eq.s32.totalorder %s15, 1
    %p75 = scmp.ne.s32.totalorder %s70, %s72
    %p76 = scmp.eq.s32.totalorder %s15, 0
    %p77 = por %p75, %p76
    %p78 = scmp.ne.s32.totalorder %s70, %s72
    %p79 = scmp.eq.s32.totalorder %s20, 1
    %p80 = por %p78, %p79
    %p81 = scmp.ne.s32.totalorder %s72, %s73
    %p82 = scmp.eq.s32.totalorder %s20, 0
    %p83 = por %p81, %p82
    %p84 = scmp.ne.s32.totalorder %s72, %s73
    %p85 = scmp.eq.s32.totalorder %s21, 1
    %p86 = por %p84, %p85
    %p88 = scmp.ne.s32.totalorder %s73, %s87
    %p89 = scmp.eq.s32.totalorder %s21, 0
    %p90 = por %p88, %p89
    %s92 = sadd.s32 %s91, 1
    %p95 = scmp.eq.s32.totalorder %s15, 1
    %p96 = scmp.ne.s32.totalorder %s91, %s93
    %p97 = scmp.eq.s32.totalorder %s15, 0
    %p98 = por %p96, %p97
    %p99 = scmp.ne.s32.totalorder %s91, %s93
    %p100 = scmp.eq.s32.totalorder %s20, 1
    %p101 = por %p99, %p100
    %p102 = scmp.ne.s32.totalorder %s93, %s94
    %p103 = scmp.eq.s32.totalorder %s20, 0
    %p104 = por %p102, %p103
    %p105 = scmp.ne.s32.totalorder %s93, %s94
    %p106 = scmp.eq.s32.totalorder %s21, 1
    %p107 = por %p105, %p106
    %p109 = scmp.ne.s32.totalorder %s94, %s108
    %p110 = scmp.eq.s32.totalorder %s21, 0
    %p111 = por %p109, %p110
    %s113 = sadd.s32 %s112, 1
    %p116 = scmp.eq.s32.totalorder %s15, 1
    %p117 = scmp.ne.s32.totalorder %s112, %s114
    %p118 = scmp.eq.s32.totalorder %s15, 0
    %p119 = por %p117, %p118
    %p120 = scmp.ne.s32.totalorder %s112, %s114
    %p121 = scmp.eq.s32.totalorder %s20, 1
    %p122 = por %p120, %p121
    %p123 = scmp.ne.s32.totalorder %s114, %s115
    %p124 = scmp.eq.s32.totalorder %s20, 0
    %p125 = por %p123, %p124
    %p126 = scmp.ne.s32.totalorder %s114, %s115
    %p127 = scmp.eq.s32.totalorder %s21, 1
    %p128 = por %p126, %p127
    %p130 = scmp.ne.s32.totalorder %s115, %s129
    %p131 = scmp.eq.s32.totalorder %s21, 0
    %p132 = por %p130, %p131
    %s134 = sadd.s32 %s133, 1
    %p137 = scmp.eq.s32.totalorder %s15, 1
    %p138 = scmp.ne.s32.totalorder %s133, %s135
    %p139 = scmp.eq.s32.totalorder %s15, 0
    %p140 = por %p138, %p139
    %p141 = scmp.ne.s32.totalorder %s133, %s135
    %p142 = scmp.eq.s32.totalorder %s20, 1
    %p143 = por %p141, %p142
    %p144 = scmp.ne.s32.totalorder %s135, %s136
    %p145 = scmp.eq.s32.totalorder %s20, 0
    %p146 = por %p144, %p145
    %p147 = scmp.ne.s32.totalorder %s135, %s136
    %p148 = scmp.eq.s32.totalorder %s21, 1
    %p149 = por %p147, %p148
    %p151 = scmp.ne.s32.totalorder %s136, %s150
    %p152 = scmp.eq.s32.totalorder %s21, 0
    %p153 = por %p151, %p152
    %s154 = ssub.s32 %s15, %s22
    %p155 = scmp.eq.s32.totalorder %s154, 0
    %s157 = sadd.s32 %s156, 1
    %s158 = scalar_select %p155, %s156, %s157
    %p161 = pneg %p155
    %p162 = scmp.eq.s32.totalorder %s15, 1
    %p163 = por %p161, %p162
    %p164 = scmp.ne.s32.totalorder %s156, %s159
    %p165 = scmp.eq.s32.totalorder %s15, 0
    %p166 = por %p164, %p165
    %p167 = scmp.ne.s32.totalorder %s156, %s159
    %p168 = scmp.eq.s32.totalorder %s20, 1
    %p169 = por %p167, %p168
    %p170 = scmp.ne.s32.totalorder %s159, %s160
    %p171 = scmp.eq.s32.totalorder %s20, 0
    %p172 = por %p170, %p171
    %p173 = scmp.ne.s32.totalorder %s159, %s160
    %p174 = scmp.eq.s32.totalorder %s21, 1
    %p175 = por %p173, %p174
    %p177 = scmp.ne.s32.totalorder %s160, %s176
    %p178 = scmp.eq.s32.totalorder %s21, 0
    %p179 = por %p177, %p178
    %s180 = ssub.s32 %s15, %s22
    %p181 = scmp.eq.s32.totalorder %s180, 0
    %s183 = sadd.s32 %s182, 1
    %s184 = scalar_select %p181, %s182, %s183
    %p187 = pneg %p181
    %p188 = scmp.eq.s32.totalorder %s15, 1
    %p189 = por %p187, %p188
    %p190 = scmp.ne.s32.totalorder %s182, %s185
    %p191 = scmp.eq.s32.totalorder %s15, 0
    %p192 = por %p190, %p191
    %p193 = scmp.ne.s32.totalorder %s182, %s185
    %p194 = scmp.eq.s32.totalorder %s20, 1
    %p195 = por %p193, %p194
    %p196 = scmp.ne.s32.totalorder %s185, %s186
    %p197 = scmp.eq.s32.totalorder %s20, 0
    %p198 = por %p196, %p197
    %p199 = scmp.ne.s32.totalorder %s185, %s186
    %p200 = scmp.eq.s32.totalorder %s21, 1
    %p201 = por %p199, %p200
    %p203 = scmp.ne.s32.totalorder %s186, %s202
    %p204 = scmp.eq.s32.totalorder %s21, 0
    %p205 = por %p203, %p204
    %s206 = ssub.s32 %s15, %s22
    %p207 = scmp.eq.s32.totalorder %s206, 0
    %s209 = sadd.s32 %s208, 1
    %s210 = scalar_select %p207, %s208, %s209
    %p213 = pneg %p207
    %p214 = scmp.eq.s32.totalorder %s15, 1
    %p215 = por %p213, %p214
    %p216 = scmp.ne.s32.totalorder %s208, %s211
    %p217 = scmp.eq.s32.totalorder %s15, 0
    %p218 = por %p216, %p217
    %p219 = scmp.ne.s32.totalorder %s208, %s211
    %p220 = scmp.eq.s32.totalorder %s20, 1
    %p221 = por %p219, %p220
    %p222 = scmp.ne.s32.totalorder %s211, %s212
    %p223 = scmp.eq.s32.totalorder %s20, 0
    %p224 = por %p222, %p223
    %p225 = scmp.ne.s32.totalorder %s211, %s212
    %p226 = scmp.eq.s32.totalorder %s21, 1
    %p227 = por %p225, %p226
    %p229 = scmp.ne.s32.totalorder %s212, %s228
    %p230 = scmp.eq.s32.totalorder %s21, 0
    %p231 = por %p229, %p230
    %p232 = scmp.le.s32.totalorder 1, %s15
    %p233 = scmp.lt.s32.totalorder %s15, 3
    %p234 = pnand %p232, %p233
    %p235 = pneg %p234
    // Predicated region
    $region9: #{vqvae_forward.1} parent=5 // pred_check
      _
    $region10: #{vqvae_forward.1} parent=5 // pred_check_branch
      %237 = sbr.rel (%p234) target = $region12
    $region11: #{vqvae_forward.1} parent=5 // pred_region
      %s238 = ssub.s32 %s15, 1
      // Predicated region
      $region13: #{vqvae_forward.1} parent=11 // pred_check
        %p239 = pneg %p62
      $region14: #{vqvae_forward.1} parent=11 // pred_check_branch
        %241 = sbr.rel (%p239) target = $region16
      $region15: #{vqvae_forward.1} parent=11 // pred_region
        _
      $region16: #{vqvae_forward.1} parent=11 // pred_fallthru
        _
      // Predicated region
      $region17: #{vqvae_forward.1} parent=11 // pred_check
        %p242 = pneg %p83
      $region18: #{vqvae_forward.1} parent=11 // pred_check_branch
        %244 = sbr.rel (%p242) target = $region20
      $region19: #{vqvae_forward.1} parent=11 // pred_region
        _
      $region20: #{vqvae_forward.1} parent=11 // pred_fallthru
        _
      // Predicated region
      $region21: #{vqvae_forward.1} parent=11 // pred_check
        %p245 = pneg %p104
      $region22: #{vqvae_forward.1} parent=11 // pred_check_branch
        %247 = sbr.rel (%p245) target = $region24
      $region23: #{vqvae_forward.1} parent=11 // pred_region
        _
      $region24: #{vqvae_forward.1} parent=11 // pred_fallthru
        _
      // Predicated region
      $region25: #{vqvae_forward.1} parent=11 // pred_check
        %p248 = pneg %p125
      $region26: #{vqvae_forward.1} parent=11 // pred_check_branch
        %250 = sbr.rel (%p248) target = $region28
      $region27: #{vqvae_forward.1} parent=11 // pred_region
        _
      $region28: #{vqvae_forward.1} parent=11 // pred_fallthru
        _
      // Predicated region
      $region29: #{vqvae_forward.1} parent=11 // pred_check
        %p251 = pneg %p146
      $region30: #{vqvae_forward.1} parent=11 // pred_check_branch
        %253 = sbr.rel (%p251) target = $region32
      $region31: #{vqvae_forward.1} parent=11 // pred_region
        _
      $region32: #{vqvae_forward.1} parent=11 // pred_fallthru
        _
    $region12: #{vqvae_forward.1} parent=5 // pred_fallthru
      _
    %p254 = scmp.lt.s32.totalorder %s15, 2
    // Predicated region
    $region33: #{vqvae_forward.1} parent=5 // pred_check
      %p255 = pneg %p254
    $region34: #{vqvae_forward.1} parent=5 // pred_check_branch
      %257 = sbr.rel (%p255) target = $region36
    $region35: #{vqvae_forward.1} parent=5 // pred_region
      // Predicated region
      $region37: #{vqvae_forward.1} parent=35 // pred_check
        %p258 = pneg %p35
      $region38: #{vqvae_forward.1} parent=35 // pred_check_branch
        %260 = sbr.rel (%p258) target = $region40
      $region39: #{vqvae_forward.1} parent=35 // pred_region
        %s261 = smul.u32 2, %s15
        %p262 = scmp.lt.s32.totalorder %s261, 3
        %s263 = scalar_select %p262, %s261, 3
        %s264 = smul.addr %s263, 4
        %s265 = scalar_lea.vmem %s0, %s264
        %s266 = smul.u32 2, %s15
      $region40: #{vqvae_forward.1} parent=35 // pred_fallthru
        _
    $region36: #{vqvae_forward.1} parent=5 // pred_fallthru
      _
    %p267 = scmp.le.s32.totalorder 1, %s15
    %p268 = scmp.lt.s32.totalorder %s15, 3
    %p269 = pnand %p267, %p268
    %p270 = pneg %p269
    // Predicated region
    $region41: #{vqvae_forward.1} parent=5 // pred_check
      _
    $region42: #{vqvae_forward.1} parent=5 // pred_check_branch
      %272 = sbr.rel (%p269) target = $region44
    $region43: #{vqvae_forward.1} parent=5 // pred_region
      %s273 = ssub.s32 %s15, 1
      %s274 = smul.u32 2, %s20
      %p275 = scmp.lt.s32.totalorder %s274, 3
      %s276 = scalar_select %p275, %s274, 3
      %s277 = smul.addr %s276, 4
      %s278 = scalar_lea.vmem %s0, %s277
      %p279 = pneg %p41
      %p280 = pneg %p38
      %p281 = pneg %p62
      %p282 = pneg %p59
      %p283 = pneg %p83
      %p284 = pneg %p80
      %p285 = pneg %p104
      %p286 = pneg %p101
      %p287 = pneg %p125
      %p288 = pneg %p122
      %p289 = pneg %p146
      %p290 = pneg %p143
      %p291 = pneg %p172
      %p292 = pneg %p169
      %s293 = smul.u32 2, %s20
      %p294 = scmp.lt.s32.totalorder %s293, 3
      %s295 = scalar_select %p294, %s293, 3
      %s296 = smul.addr %s295, 4
      %s297 = scalar_lea.vmem %s6, %s296
      %p298 = pneg %p198
      %p299 = pneg %p195
      %p300 = scmp.lt.s32.totalorder %s20, 1
      %s301 = scalar_select %p300, %s20, 1
      %s302 = scalar_lea.vmem %s7, %s301
      %p303 = pneg %p224
      %p304 = pneg %p221
      %p305 = scmp.lt.s32.totalorder %s20, 1
      %s306 = scalar_select %p305, %s20, 1
      %s307 = smul.addr %s306, 8
      %s308 = smul.addr %s307, 8
      %s309 = scalar_lea.vmem %s8, %s308
      %s310 = smul.u32 2, %s20
      %p311 = scmp.lt.s32.totalorder %s310, 3
      %s312 = scalar_select %p311, %s310, 3
      %s313 = smul.addr %s312, 4
      %s314 = scalar_lea.vmem %s0, %s313
      %s315 = smul.u32 2, %s20
      %s316 = smul.u32 2, %s20
      %p317 = scmp.lt.s32.totalorder %s316, 3
      %s318 = scalar_select %p317, %s316, 3
      %s319 = smul.addr %s318, 4
      %s320 = scalar_lea.vmem %s6, %s319
      %s321 = smul.u32 2, %s20
      %p322 = scmp.lt.s32.totalorder %s20, 1
      %s323 = scalar_select %p322, %s20, 1
      %s324 = scalar_lea.vmem %s7, %s323
      %p325 = scmp.lt.s32.totalorder %s20, 1
      %s326 = scalar_select %p325, %s20, 1
      %s327 = smul.addr %s326, 8
      %s328 = smul.addr %s327, 8
      %s329 = scalar_lea.vmem %s8, %s328
      %v330 = vld [vmem:[%s314] sm:$0xff]
      %v331 = vld [vmem:[%s1] sm:$0xff]
      %v332 = vld [vmem:[%s1 + $0x8] sm:$0xff]
      %v333 = vld [vmem:[%s1 + $0x10] sm:$0xff]
      %v334 = vld [vmem:[%s1 + $0x18] sm:$0xff]
      %v335 = vld [vmem:[%s1 + $0x20] sm:$0xff]
      %v336 = vld [vmem:[%s1 + $0x28] sm:$0xff]
      %v337 = vld [vmem:[%s1 + $0x30] sm:$0xff]
      %v338 = vld [vmem:[%s1 + $0x38] sm:$0xff]
      %v339 = vld [vmem:[%s1 + $0x40] sm:$0xff]
      %v340 = vld [vmem:[%s1 + $0x48] sm:$0xff]
      %v341 = vld [vmem:[%s1 + $0x50] sm:$0xff]
      %v342 = vld [vmem:[%s1 + $0x58] sm:$0xff]
      %v344 = vcombine.high %v330, %v330
      %vm345 = vcmask 31744
      %v347 = vsel %vm345, %v331, 0
      %v350 = vsel %vm345, %v332, 0
      %v353 = vsel %vm345, %v333, 0
      %v356 = vsel %vm345, %v334, 0
      %v359 = vsel %vm345, %v335, 0
      %v362 = vsel %vm345, %v336, 0
      %v365 = vsel %vm345, %v337, 0
      %v368 = vsel %vm345, %v338, 0
      %v371 = vsel %vm345, %v339, 0
      %v374 = vsel %vm345, %v340, 0
      %v377 = vsel %vm345, %v341, 0
      %v380 = vsel %vm345, %v342, 0
      %vm382 = vcmask 1043456
      %v383 = vsel %vm382, %v330, 0
      %v385 = vsel %vm382, %v344, 0
      %387 = vmatprep.subr.mxu0 0.0
      %388 = vmatpush1.msra.mxu0 0.0
      %389 = vmatprep.subr.mxu0 0.0
      %390 = vmatpush1.msra.mxu0 0.0
      %391 = vmatprep.subr.mxu0 0.0
      %392 = vmatpush1.msra.mxu0 0.0
      %393 = vmatprep.subr.mxu0 0.0
      %394 = vmatpush1.msra.mxu0 0.0
      %395 = vmatprep.subr.mxu0 0.0
      %396 = vmatpush1.msra.mxu0 0.0
      %397 = vmatprep.subr.mxu0 0.0
      %398 = vmatpush1.msra.mxu0 0.0
      %399 = vmatprep.subr.mxu0 0.0
      %400 = vmatpush1.msra.mxu0 0.0
      %401 = vmatprep.subr.mxu0 0.0
      %402 = vmatpush1.msra.mxu0 0.0
      %403 = vmatprep.subr.mxu0 0.0
      %404 = vmatpush1.msra.mxu0 0.0
      %405 = vmatprep.subr.mxu0 0.0
      %406 = vmatpush1.msra.mxu0 0.0
      %407 = vmatprep.subr.mxu0 0.0
      %408 = vmatpush1.msra.mxu0 0.0
      %409 = vmatprep.subr.mxu0 0.0
      %410 = vmatpush1.msra.mxu0 0.0
      %411 = vmatprep.subr.mxu0 0.0
      %412 = vmatpush1.msra.mxu0 0.0
      %413 = vmatprep.subr.mxu0 0.0
      %414 = vmatpush1.msra.mxu0 0.0
      %415 = vmatprep.subr.mxu0 0.0
      %416 = vmatpush1.msra.mxu0 0.0
      %417 = vmatprep.subr.mxu0 %v385
      %418 = vmatpush1.msra.mxu0 %v383
      %419 = vmatprep.subr.mxu0 0.0
      %420 = vmatpush2.msra.mxu0 0.0
      %421 = vmatprep.subr.mxu0 0.0
      %422 = vmatpush2.msra.mxu0 0.0
      %423 = vmatprep.subr.mxu0 0.0
      %424 = vmatpush2.msra.mxu0 0.0
      %425 = vmatprep.subr.mxu0 0.0
      %426 = vmatpush2.msra.mxu0 0.0
      %427 = vmatprep.subr.mxu0 0.0
      %428 = vmatpush2.msra.mxu0 0.0
      %429 = vmatprep.subr.mxu0 0.0
      %430 = vmatpush2.msra.mxu0 0.0
      %431 = vmatprep.subr.mxu0 0.0
      %432 = vmatpush2.msra.mxu0 0.0
      %433 = vmatprep.subr.mxu0 0.0
      %434 = vmatpush2.msra.mxu0 0.0
      %435 = vmatprep.subr.mxu0 0.0
      %436 = vmatpush2.msra.mxu0 0.0
      %437 = vmatprep.subr.mxu0 0.0
      %438 = vmatpush2.msra.mxu0 0.0
      %439 = vmatprep.subr.mxu0 0.0
      %440 = vmatpush2.msra.mxu0 0.0
      %441 = vmatprep.subr.mxu0 0.0
      %442 = vmatpush2.msra.mxu0 0.0
      %443 = vmatprep.subr.mxu0 0.0
      %444 = vmatpush2.msra.mxu0 0.0
      %445 = vmatprep.subr.mxu0 0.0
      %446 = vmatpush2.msra.mxu0 0.0
      %447 = vmatprep.subr.mxu0 0.0
      %448 = vmatpush2.msra.mxu0 0.0
      %449 = vmatprep.subr.mxu0 0.0
      %450 = vmatpush2.msra.mxu0 0.0
      %451 = vmatprep.mubr.f32.mxu0 0.0
      %452 = vmatmul.mubr.f32.gmra.mxu0 %v347
      %v453 = vpop.f32.mrf.mxu0
      %v454 = vadd.f32 0.0, %v453
      %v455 = vpop.f32.mrf.mxu0
      %v456 = vadd.f32 0.0, %v455
      %457 = vmatprep.mubr.f32.mxu0 0.0
      %458 = vmatmul.mubr.f32.gmra.mxu0 %v350
      %v459 = vpop.f32.mrf.mxu0
      %v460 = vadd.f32 0.0, %v459
      %v461 = vpop.f32.mrf.mxu0
      %v462 = vadd.f32 0.0, %v461
      %463 = vmatprep.mubr.f32.mxu0 0.0
      %464 = vmatmul.mubr.f32.gmra.mxu0 %v353
      %v465 = vpop.f32.mrf.mxu0
      %v466 = vadd.f32 0.0, %v465
      %v467 = vpop.f32.mrf.mxu0
      %v468 = vadd.f32 0.0, %v467
      %469 = vmatprep.mubr.f32.mxu0 0.0
      %470 = vmatmul.mubr.f32.gmra.mxu0 %v356
      %v471 = vpop.f32.mrf.mxu0
      %v472 = vadd.f32 0.0, %v471
      %v473 = vpop.f32.mrf.mxu0
      %v474 = vadd.f32 0.0, %v473
      %475 = vmatprep.mubr.f32.mxu0 0.0
      %476 = vmatmul.mubr.f32.gmra.mxu0 %v359
      %v477 = vpop.f32.mrf.mxu0
      %v478 = vadd.f32 0.0, %v477
      %v479 = vpop.f32.mrf.mxu0
      %v480 = vadd.f32 0.0, %v479
      %481 = vmatprep.mubr.f32.mxu0 0.0
      %482 = vmatmul.mubr.f32.gmra.mxu0 %v362
      %v483 = vpop.f32.mrf.mxu0
      %v484 = vadd.f32 0.0, %v483
      %v485 = vpop.f32.mrf.mxu0
      %v486 = vadd.f32 0.0, %v485
      %487 = vmatprep.mubr.f32.mxu0 0.0
      %488 = vmatmul.mubr.f32.gmra.mxu0 %v365
      %v489 = vpop.f32.mrf.mxu0
      %v490 = vadd.f32 0.0, %v489
      %v491 = vpop.f32.mrf.mxu0
      %v492 = vadd.f32 0.0, %v491
      %493 = vmatprep.mubr.f32.mxu0 0.0
      %494 = vmatmul.mubr.f32.gmra.mxu0 %v368
      %v495 = vpop.f32.mrf.mxu0
      %v496 = vadd.f32 0.0, %v495
      %v497 = vpop.f32.mrf.mxu0
      %v498 = vadd.f32 0.0, %v497
      %499 = vmatprep.mubr.f32.mxu0 0.0
      %500 = vmatmul.mubr.f32.gmra.mxu0 %v371
      %v501 = vpop.f32.mrf.mxu0
      %v502 = vadd.f32 0.0, %v501
      %v503 = vpop.f32.mrf.mxu0
      %v504 = vadd.f32 0.0, %v503
      %505 = vmatprep.mubr.f32.mxu0 0.0
      %506 = vmatmul.mubr.f32.gmra.mxu0 %v374
      %v507 = vpop.f32.mrf.mxu0
      %v508 = vadd.f32 0.0, %v507
      %v509 = vpop.f32.mrf.mxu0
      %v510 = vadd.f32 0.0, %v509
      %511 = vmatprep.mubr.f32.mxu0 0.0
      %512 = vmatmul.mubr.f32.gmra.mxu0 %v377
      %v513 = vpop.f32.mrf.mxu0
      %v514 = vadd.f32 0.0, %v513
      %v515 = vpop.f32.mrf.mxu0
      %v516 = vadd.f32 0.0, %v515
      %517 = vmatprep.mubr.f32.mxu0 0.0
      %518 = vmatmul.mubr.f32.gmra.mxu0 %v380
      %v519 = vpop.f32.mrf.mxu0
      %v520 = vadd.f32 0.0, %v519
      %v521 = vpop.f32.mrf.mxu0
      %v522 = vadd.f32 0.0, %v521
      %523 = vdwg.mxu0
      %v524 = vld [vmem:[%s2] sm:$0xff]
      %v525 = vld [vmem:[%s2 + $0x8] sm:$0xff]
      %v526 = vld [vmem:[%s2 + $0x10] sm:$0xff]
      %v527 = vld [vmem:[%s2 + $0x18] sm:$0xff]
      %529 = vset.pattern.permute.xlu0 0
      %530 = vperm.xlu0 %529, %v524
      %v531 = vpop.permute.xlu0 %530
      %534 = vset.pattern.permute.xlu0 0
      %535 = vperm.xlu0 %534, %v525
      %v536 = vpop.permute.xlu0 %535
      %539 = vset.pattern.permute.xlu0 0
      %540 = vperm.xlu0 %539, %v526
      %v541 = vpop.permute.xlu0 %540
      %544 = vset.pattern.permute.xlu0 0
      %545 = vperm.xlu0 %544, %v527
      %v546 = vpop.permute.xlu0 %545
      %v548 = vadd.f32 %v454, %v531
      %v549 = vadd.f32 %v456, %v531
      %v550 = vadd.f32 %v460, %v536
      %v551 = vadd.f32 %v462, %v536
      %v552 = vadd.f32 %v466, %v541
      %v553 = vadd.f32 %v468, %v541
      %v554 = vadd.f32 %v472, %v546
      %v555 = vadd.f32 %v474, %v546
      %v556 = vld [vmem:[%s3] sm:$0xff]
      %v557 = vld [vmem:[%s3 + $0x8] sm:$0xff]
      %v558 = vld [vmem:[%s3 + $0x10] sm:$0xff]
      %v559 = vld [vmem:[%s3 + $0x18] sm:$0xff]
      %v560 = vld [vmem:[%s3 + $0x20] sm:$0xff]
      %v561 = vld [vmem:[%s3 + $0x28] sm:$0xff]
      %v562 = vld [vmem:[%s3 + $0x30] sm:$0xff]
      %v563 = vld [vmem:[%s3 + $0x38] sm:$0xff]
      %565 = vset.pattern.permute.xlu0 0
      %566 = vperm.xlu0 %565, %v556
      %v567 = vpop.permute.xlu0 %566
      %570 = vset.pattern.permute.xlu0 0
      %571 = vperm.xlu0 %570, %v557
      %v572 = vpop.permute.xlu0 %571
      %575 = vset.pattern.permute.xlu0 0
      %576 = vperm.xlu0 %575, %v558
      %v577 = vpop.permute.xlu0 %576
      %580 = vset.pattern.permute.xlu0 0
      %581 = vperm.xlu0 %580, %v559
      %v582 = vpop.permute.xlu0 %581
      %585 = vset.pattern.permute.xlu0 0
      %586 = vperm.xlu0 %585, %v560
      %v587 = vpop.permute.xlu0 %586
      %590 = vset.pattern.permute.xlu0 0
      %591 = vperm.xlu0 %590, %v561
      %v592 = vpop.permute.xlu0 %591
      %595 = vset.pattern.permute.xlu0 0
      %596 = vperm.xlu0 %595, %v562
      %v597 = vpop.permute.xlu0 %596
      %600 = vset.pattern.permute.xlu0 0
      %601 = vperm.xlu0 %600, %v563
      %v602 = vpop.permute.xlu0 %601
      %v604 = vadd.f32 %v478, %v567
      %v605 = vadd.f32 %v480, %v567
      %v606 = vadd.f32 %v484, %v572
      %v607 = vadd.f32 %v486, %v572
      %v608 = vadd.f32 %v490, %v577
      %v609 = vadd.f32 %v492, %v577
      %v610 = vadd.f32 %v496, %v582
      %v611 = vadd.f32 %v498, %v582
      %v612 = vadd.f32 %v502, %v587
      %v613 = vadd.f32 %v504, %v587
      %v614 = vadd.f32 %v508, %v592
      %v615 = vadd.f32 %v510, %v592
      %v616 = vadd.f32 %v514, %v597
      %v617 = vadd.f32 %v516, %v597
      %v618 = vadd.f32 %v520, %v602
      %v619 = vadd.f32 %v522, %v602
      %v620 = vlaneseq
      %v621 = vshrl.u32 %v620, 7
      %v622 = vadd.s32 %v621, 8
      %v623 = vadd.s32 %v621, 16
      %v624 = vadd.s32 %v621, 24
      %v625 = vadd.s32 %v621, 32
      %v626 = vadd.s32 %v621, 40
      %v627 = vadd.s32 %v621, 48
      %v628 = vadd.s32 %v621, 56
      %v629 = vmin.f32 %v604, %v608
      %v630 = vmin.f32 %v606, %v610
      %v631 = vmin.f32 %v629, %v612
      %v632 = vmin.f32 %v630, %v614
      %v633 = vmin.f32 %v631, %v616
      %v634 = vmin.f32 %v632, %v618
      %v635 = vmin.f32 %v633, %v634
      %v636 = vrot.slane %v635, 4
      %v637 = vmin.f32 %v635, %v636
      %v638 = vrot.slane %v637, 2
      %v639 = vmin.f32 %v637, %v638
      %v640 = vrot.slane %v639, 1
      %v641 = vmin.f32 %v639, %v640
      %v642 = vmin.f32 %v605, %v609
      %v643 = vmin.f32 %v607, %v611
      %v644 = vmin.f32 %v642, %v613
      %v645 = vmin.f32 %v643, %v615
      %v646 = vmin.f32 %v644, %v617
      %v647 = vmin.f32 %v645, %v619
      %v648 = vmin.f32 %v646, %v647
      %v649 = vrot.slane %v648, 4
      %v650 = vmin.f32 %v648, %v649
      %v651 = vrot.slane %v650, 2
      %v652 = vmin.f32 %v650, %v651
      %v653 = vrot.slane %v652, 1
      %v654 = vmin.f32 %v652, %v653
      %vm655 = vcmp.eq.f32.partialorder %v604, %v641
      %vm656 = vcmp.eq.f32.partialorder %v605, %v654
      %vm657 = vcmp.eq.f32.partialorder %v606, %v641
      %vm658 = vcmp.eq.f32.partialorder %v607, %v654
      %vm659 = vcmp.eq.f32.partialorder %v608, %v641
      %vm660 = vcmp.eq.f32.partialorder %v609, %v654
      %vm661 = vcmp.eq.f32.partialorder %v610, %v641
      %vm662 = vcmp.eq.f32.partialorder %v611, %v654
      %vm663 = vcmp.eq.f32.partialorder %v612, %v641
      %vm664 = vcmp.eq.f32.partialorder %v613, %v654
      %vm665 = vcmp.eq.f32.partialorder %v614, %v641
      %vm666 = vcmp.eq.f32.partialorder %v615, %v654
      %vm667 = vcmp.eq.f32.partialorder %v616, %v641
      %vm668 = vcmp.eq.f32.partialorder %v617, %v654
      %vm669 = vcmp.eq.f32.partialorder %v618, %v641
      %vm670 = vcmp.eq.f32.partialorder %v619, %v654
      %v671 = vsel %vm655, %v621, 64
      %v672 = vsel %vm656, %v621, 64
      %v673 = vsel %vm657, %v622, 64
      %v674 = vsel %vm658, %v622, 64
      %v675 = vsel %vm659, %v623, 64
      %v676 = vsel %vm660, %v623, 64
      %v677 = vsel %vm661, %v624, 64
      %v678 = vsel %vm662, %v624, 64
      %v679 = vsel %vm663, %v625, 64
      %v680 = vsel %vm664, %v625, 64
      %v681 = vsel %vm665, %v626, 64
      %v682 = vsel %vm666, %v626, 64
      %v683 = vsel %vm667, %v627, 64
      %v684 = vsel %vm668, %v627, 64
      %v685 = vsel %vm669, %v628, 64
      %v686 = vsel %vm670, %v628, 64
      %vm687 = vcmp.lt.s32.totalorder %v671, %v675
      %v688 = vsel %vm687, %v671, %v675
      %vm689 = vcmp.lt.s32.totalorder %v673, %v677
      %v690 = vsel %vm689, %v673, %v677
      %vm691 = vcmp.lt.s32.totalorder %v688, %v679
      %v692 = vsel %vm691, %v688, %v679
      %vm693 = vcmp.lt.s32.totalorder %v690, %v681
      %v694 = vsel %vm693, %v690, %v681
      %vm695 = vcmp.lt.s32.totalorder %v692, %v683
      %v696 = vsel %vm695, %v692, %v683
      %vm697 = vcmp.lt.s32.totalorder %v694, %v685
      %v698 = vsel %vm697, %v694, %v685
      %vm699 = vcmp.lt.s32.totalorder %v696, %v698
      %v700 = vsel %vm699, %v696, %v698
      %v701 = vrot.slane %v700, 4
      %vm702 = vcmp.lt.s32.totalorder %v700, %v701
      %v703 = vsel %vm702, %v700, %v701
      %v704 = vrot.slane %v703, 2
      %vm705 = vcmp.lt.s32.totalorder %v703, %v704
      %v706 = vsel %vm705, %v703, %v704
      %v707 = vrot.slane %v706, 1
      %vm708 = vcmp.lt.s32.totalorder %v706, %v707
      %v709 = vsel %vm708, %v706, %v707
      %vm710 = vcmp.lt.s32.totalorder %v672, %v676
      %v711 = vsel %vm710, %v672, %v676
      %vm712 = vcmp.lt.s32.totalorder %v674, %v678
      %v713 = vsel %vm712, %v674, %v678
      %vm714 = vcmp.lt.s32.totalorder %v711, %v680
      %v715 = vsel %vm714, %v711, %v680
      %vm716 = vcmp.lt.s32.totalorder %v713, %v682
      %v717 = vsel %vm716, %v713, %v682
      %vm718 = vcmp.lt.s32.totalorder %v715, %v684
      %v719 = vsel %vm718, %v715, %v684
      %vm720 = vcmp.lt.s32.totalorder %v717, %v686
      %v721 = vsel %vm720, %v717, %v686
      %vm722 = vcmp.lt.s32.totalorder %v719, %v721
      %v723 = vsel %vm722, %v719, %v721
      %v724 = vrot.slane %v723, 4
      %vm725 = vcmp.lt.s32.totalorder %v723, %v724
      %v726 = vsel %vm725, %v723, %v724
      %v727 = vrot.slane %v726, 2
      %vm728 = vcmp.lt.s32.totalorder %v726, %v727
      %v729 = vsel %vm728, %v726, %v727
      %v730 = vrot.slane %v729, 1
      %vm731 = vcmp.lt.s32.totalorder %v729, %v730
      %v732 = vsel %vm731, %v729, %v730
      %vm733 = vcmp.eq.s32.totalorder %v621, %v709
      %vm734 = vcmp.eq.s32.totalorder %v621, %v732
      %vm735 = vcmp.eq.s32.totalorder %v622, %v709
      %vm736 = vcmp.eq.s32.totalorder %v622, %v732
      %vm737 = vcmp.eq.s32.totalorder %v623, %v709
      %vm738 = vcmp.eq.s32.totalorder %v623, %v732
      %vm739 = vcmp.eq.s32.totalorder %v624, %v709
      %vm740 = vcmp.eq.s32.totalorder %v624, %v732
      %vm741 = vcmp.eq.s32.totalorder %v625, %v709
      %vm742 = vcmp.eq.s32.totalorder %v625, %v732
      %vm743 = vcmp.eq.s32.totalorder %v626, %v709
      %vm744 = vcmp.eq.s32.totalorder %v626, %v732
      %vm745 = vcmp.eq.s32.totalorder %v627, %v709
      %vm746 = vcmp.eq.s32.totalorder %v627, %v732
      %vm747 = vcmp.eq.s32.totalorder %v628, %v709
      %vm748 = vcmp.eq.s32.totalorder %v628, %v732
      %v749 = vsel %vm733, 1, 0
      %v750 = vsel %vm734, 1, 0
      %v751 = vsel %vm735, 1, 0
      %v752 = vsel %vm736, 1, 0
      %v753 = vsel %vm737, 1, 0
      %v754 = vsel %vm738, 1, 0
      %v755 = vsel %vm739, 1, 0
      %v756 = vsel %vm740, 1, 0
      %v757 = vsel %vm741, 1, 0
      %v758 = vsel %vm742, 1, 0
      %v759 = vsel %vm743, 1, 0
      %v760 = vsel %vm744, 1, 0
      %v761 = vsel %vm745, 1, 0
      %v762 = vsel %vm746, 1, 0
      %v763 = vsel %vm747, 1, 0
      %v764 = vsel %vm748, 1, 0
      %v765 = vcvt.s32.f32 %v749
      %v766 = vcvt.s32.f32 %v750
      %v767 = vcvt.s32.f32 %v751
      %v768 = vcvt.s32.f32 %v752
      %v769 = vcvt.s32.f32 %v753
      %v770 = vcvt.s32.f32 %v754
      %v771 = vcvt.s32.f32 %v755
      %v772 = vcvt.s32.f32 %v756
      %v773 = vcvt.s32.f32 %v757
      %v774 = vcvt.s32.f32 %v758
      %v775 = vcvt.s32.f32 %v759
      %v776 = vcvt.s32.f32 %v760
      %v777 = vcvt.s32.f32 %v761
      %v778 = vcvt.s32.f32 %v762
      %v779 = vcvt.s32.f32 %v763
      %v780 = vcvt.s32.f32 %v764
      %v781 = vmul.f32 %v548, %v548
      %v782 = vmul.f32 %v549, %v549
      %v783 = vmul.f32 %v550, %v550
      %v784 = vmul.f32 %v551, %v551
      %v785 = vmul.f32 %v552, %v552
      %v786 = vmul.f32 %v553, %v553
      %v787 = vmul.f32 %v554, %v554
      %v788 = vmul.f32 %v555, %v555
      %vm789 = vcmask 261120
      %v791 = vsel %vm789, 1.0, 0
      %793 = vmatprep.subr.mxu0 0.0
      %794 = vmatpush1.msra.mxu0 0.0
      %795 = vmatprep.subr.mxu0 0.0
      %796 = vmatpush1.msra.mxu0 0.0
      %797 = vmatprep.subr.mxu0 0.0
      %798 = vmatpush1.msra.mxu0 0.0
      %799 = vmatprep.subr.mxu0 0.0
      %800 = vmatpush1.msra.mxu0 0.0
      %801 = vmatprep.subr.mxu0 0.0
      %802 = vmatpush1.msra.mxu0 0.0
      %803 = vmatprep.subr.mxu0 0.0
      %804 = vmatpush1.msra.mxu0 0.0
      %805 = vmatprep.subr.mxu0 0.0
      %806 = vmatpush1.msra.mxu0 0.0
      %807 = vmatprep.subr.mxu0 0.0
      %808 = vmatpush1.msra.mxu0 0.0
      %809 = vmatprep.subr.mxu0 0.0
      %810 = vmatpush1.msra.mxu0 0.0
      %811 = vmatprep.subr.mxu0 0.0
      %812 = vmatpush1.msra.mxu0 0.0
      %813 = vmatprep.subr.mxu0 0.0
      %814 = vmatpush1.msra.mxu0 0.0
      %815 = vmatprep.subr.mxu0 0.0
      %816 = vmatpush1.msra.mxu0 0.0
      %817 = vmatprep.subr.mxu0 %v788
      %818 = vmatpush1.msra.mxu0 %v787
      %819 = vmatprep.subr.mxu0 %v786
      %820 = vmatpush1.msra.mxu0 %v785
      %821 = vmatprep.subr.mxu0 %v784
      %822 = vmatpush1.msra.mxu0 %v783
      %823 = vmatprep.subr.mxu0 %v782
      %824 = vmatpush1.msra.mxu0 %v781
      %825 = vmatprep.subr.mxu0 0.0
      %826 = vmatpush2.msra.mxu0 0.0
      %827 = vmatprep.subr.mxu0 0.0
      %828 = vmatpush2.msra.mxu0 0.0
      %829 = vmatprep.subr.mxu0 0.0
      %830 = vmatpush2.msra.mxu0 0.0
      %831 = vmatprep.subr.mxu0 0.0
      %832 = vmatpush2.msra.mxu0 0.0
      %833 = vmatprep.subr.mxu0 0.0
      %834 = vmatpush2.msra.mxu0 0.0
      %835 = vmatprep.subr.mxu0 0.0
      %836 = vmatpush2.msra.mxu0 0.0
      %837 = vmatprep.subr.mxu0 0.0
      %838 = vmatpush2.msra.mxu0 0.0
      %839 = vmatprep.subr.mxu0 0.0
      %840 = vmatpush2.msra.mxu0 0.0
      %841 = vmatprep.subr.mxu0 0.0
      %842 = vmatpush2.msra.mxu0 0.0
      %843 = vmatprep.subr.mxu0 0.0
      %844 = vmatpush2.msra.mxu0 0.0
      %845 = vmatprep.subr.mxu0 0.0
      %846 = vmatpush2.msra.mxu0 0.0
      %847 = vmatprep.subr.mxu0 0.0
      %848 = vmatpush2.msra.mxu0 0.0
      %849 = vmatprep.subr.mxu0 0.0
      %850 = vmatpush2.msra.mxu0 0.0
      %851 = vmatprep.subr.mxu0 0.0
      %852 = vmatpush2.msra.mxu0 0.0
      %853 = vmatprep.subr.mxu0 0.0
      %854 = vmatpush2.msra.mxu0 0.0
      %855 = vmatprep.subr.mxu0 0.0
      %856 = vmatpush2.msra.mxu0 0.0
      %857 = vmatprep.mubr.f32.mxu0 0.0
      %858 = vmatmul.mubr.f32.gmra.mxu0 %v791
      %v859 = vpop.f32.mrf.mxu0
      %v860 = vadd.f32 0.0, %v859
      %v861 = vpop.f32.mrf.mxu0
      %v862 = vadd.f32 0.0, %v861
      %863 = vdwg.mxu0
      %v864 = vadd.f32 %v641, %v860
      %v865 = vadd.f32 %v654, %v862
      %vm866 = vcmask 1040384
      %v867 = vsel %vm866, %v864, 0.0
      %v868 = vsel %vm866, %v865, 0.0
      %v869 = vadd.f32 %v867, %v868
      %870 = vadd.xlane.f32.xlu0 %v869
      %v871 = vpop.xlane.xlu0 %870
      %v872 = vrot.slane %v871, 4
      %v873 = vadd.f32 %v871, %v872
      %v874 = vrot.slane %v873, 2
      %v875 = vadd.f32 %v873, %v874
      %v876 = vrot.slane %v875, 1
      %v877 = vadd.f32 %v875, %v876
      %s878 = vtos %v877
      %v879 = vstv %s878
      %vm880 = vcmask 0
      %881 = vst.msk [vmem:[%s324] sm:$0x1] %vm880, %v879
      %882 = vmatprep.subr.mxu0 0.0
      %883 = vmatpush1.msra.mxu0 1.0
      %884 = vmatprep.subr.mxu0 0.0
      %885 = vmatpush1.msra.mxu0 1.0
      %886 = vmatprep.subr.mxu0 0.0
      %887 = vmatpush1.msra.mxu0 1.0
      %888 = vmatprep.subr.mxu0 0.0
      %889 = vmatpush1.msra.mxu0 1.0
      %890 = vmatprep.subr.mxu0 0.0
      %891 = vmatpush1.msra.mxu0 1.0
      %892 = vmatprep.subr.mxu0 0.0
      %893 = vmatpush1.msra.mxu0 1.0
      %894 = vmatprep.subr.mxu0 0.0
      %895 = vmatpush1.msra.mxu0 1.0
      %896 = vmatprep.subr.mxu0 0.0
      %897 = vmatpush1.msra.mxu0 1.0
      %898 = vmatprep.subr.mxu0 0.0
      %899 = vmatpush1.msra.mxu0 1.0
      %900 = vmatprep.subr.mxu0 0.0
      %901 = vmatpush1.msra.mxu0 1.0
      %902 = vmatprep.subr.mxu0 0.0
      %903 = vmatpush1.msra.mxu0 1.0
      %904 = vmatprep.subr.mxu0 0.0
      %905 = vmatpush1.msra.mxu0 1.0
      %906 = vmatprep.subr.mxu0 0.0
      %907 = vmatpush1.msra.mxu0 1.0
      %908 = vmatprep.subr.mxu0 0.0
      %909 = vmatpush1.msra.mxu0 1.0
      %910 = vmatprep.subr.mxu0 0.0
      %911 = vmatpush1.msra.mxu0 1.0
      %912 = vmatprep.subr.mxu0 0.0
      %913 = vmatpush1.msra.mxu0 1.0
      %914 = vmatprep.subr.mxu0 0.0
      %915 = vmatpush2.msra.mxu0 1.0
      %916 = vmatprep.subr.mxu0 0.0
      %917 = vmatpush2.msra.mxu0 1.0
      %918 = vmatprep.subr.mxu0 0.0
      %919 = vmatpush2.msra.mxu0 1.0
      %920 = vmatprep.subr.mxu0 0.0
      %921 = vmatpush2.msra.mxu0 1.0
      %922 = vmatprep.subr.mxu0 0.0
      %923 = vmatpush2.msra.mxu0 1.0
      %924 = vmatprep.subr.mxu0 0.0
      %925 = vmatpush2.msra.mxu0 1.0
      %926 = vmatprep.subr.mxu0 0.0
      %927 = vmatpush2.msra.mxu0 1.0
      %928 = vmatprep.subr.mxu0 0.0
      %929 = vmatpush2.msra.mxu0 1.0
      %930 = vmatprep.subr.mxu0 0.0
      %931 = vmatpush2.msra.mxu0 1.0
      %932 = vmatprep.subr.mxu0 0.0
      %933 = vmatpush2.msra.mxu0 1.0
      %934 = vmatprep.subr.mxu0 0.0
      %935 = vmatpush2.msra.mxu0 1.0
      %936 = vmatprep.subr.mxu0 0.0
      %937 = vmatpush2.msra.mxu0 1.0
      %938 = vmatprep.subr.mxu0 0.0
      %939 = vmatpush2.msra.mxu0 1.0
      %940 = vmatprep.subr.mxu0 0.0
      %941 = vmatpush2.msra.mxu0 1.0
      %942 = vmatprep.subr.mxu0 0.0
      %943 = vmatpush2.msra.mxu0 1.0
      %944 = vmatprep.subr.mxu0 0.0
      %945 = vmatpush2.msra.mxu0 1.0
      %946 = vmatprep.mubr.f32.mxu0 %v766
      %947 = vmatmul.mubr.f32.gmra.mxu0 %v765
      %v948 = vpop.f32.mrf.mxu0
      %v949 = vadd.f32 0.0, %v948
      %v950 = vpop.f32.mrf.mxu0
      %951 = vmatprep.mubr.f32.mxu0 %v768
      %952 = vmatmul.mubr.f32.gmra.mxu0 %v767
      %v953 = vpop.f32.mrf.mxu0
      %v954 = vadd.f32 0.0, %v953
      %v955 = vpop.f32.mrf.mxu0
      %956 = vmatprep.mubr.f32.mxu0 %v770
      %957 = vmatmul.mubr.f32.gmra.mxu0 %v769
      %v958 = vpop.f32.mrf.mxu0
      %v959 = vadd.f32 0.0, %v958
      %v960 = vpop.f32.mrf.mxu0
      %961 = vmatprep.mubr.f32.mxu0 %v772
      %962 = vmatmul.mubr.f32.gmra.mxu0 %v771
      %v963 = vpop.f32.mrf.mxu0
      %v964 = vadd.f32 0.0, %v963
      %v965 = vpop.f32.mrf.mxu0
      %966 = vmatprep.mubr.f32.mxu0 %v774
      %967 = vmatmul.mubr.f32.gmra.mxu0 %v773
      %v968 = vpop.f32.mrf.mxu0
      %v969 = vadd.f32 0.0, %v968
      %v970 = vpop.f32.mrf.mxu0
      %971 = vmatprep.mubr.f32.mxu0 %v776
      %972 = vmatmul.mubr.f32.gmra.mxu0 %v775
      %v973 = vpop.f32.mrf.mxu0
      %v974 = vadd.f32 0.0, %v973
      %v975 = vpop.f32.mrf.mxu0
      %976 = vmatprep.mubr.f32.mxu0 %v778
      %977 = vmatmul.mubr.f32.gmra.mxu0 %v777
      %v978 = vpop.f32.mrf.mxu0
      %v979 = vadd.f32 0.0, %v978
      %v980 = vpop.f32.mrf.mxu0
      %981 = vmatprep.mubr.f32.mxu0 %v780
      %982 = vmatmul.mubr.f32.gmra.mxu0 %v779
      %v983 = vpop.f32.mrf.mxu0
      %v984 = vadd.f32 0.0, %v983
      %v985 = vpop.f32.mrf.mxu0
      %986 = vdwg.mxu0
      %vm987 = vcmask 7168
      %988 = vst.msk [vmem:[%s329] sm:$0xff] %vm987, %v949
      %989 = vst.msk [vmem:[%s329 + $0x8] sm:$0xff] %vm987, %v954
      %990 = vst.msk [vmem:[%s329 + $0x10] sm:$0xff] %vm987, %v959
      %991 = vst.msk [vmem:[%s329 + $0x18] sm:$0xff] %vm987, %v964
      %992 = vst.msk [vmem:[%s329 + $0x20] sm:$0xff] %vm987, %v969
      %993 = vst.msk [vmem:[%s329 + $0x28] sm:$0xff] %vm987, %v974
      %994 = vst.msk [vmem:[%s329 + $0x30] sm:$0xff] %vm987, %v979
      %995 = vst.msk [vmem:[%s329 + $0x38] sm:$0xff] %vm987, %v984
      %v996 = vld [vmem:[%s4] sm:$0xf]
      %v997 = vld [vmem:[%s5] sm:$0xf]
      %999 = vset.pattern.permute.xlu0 0
      %1000 = vperm.xlu0 %999, %v997
      %v1001 = vpop.permute.xlu0 %1000
      %vm1003 = vcmask 523264
      %v1005 = vsel %vm1003, %v996, 0
      %1007 = vmatprep.subr.mxu0 0.0
      %1008 = vmatpush1.msra.mxu0 0.0
      %1009 = vmatprep.subr.mxu0 0.0
      %1010 = vmatpush1.msra.mxu0 0.0
      %1011 = vmatprep.subr.mxu0 0.0
      %1012 = vmatpush1.msra.mxu0 0.0
      %1013 = vmatprep.subr.mxu0 0.0
      %1014 = vmatpush1.msra.mxu0 0.0
      %1015 = vmatprep.subr.mxu0 0.0
      %1016 = vmatpush1.msra.mxu0 0.0
      %1017 = vmatprep.subr.mxu0 0.0
      %1018 = vmatpush1.msra.mxu0 0.0
      %1019 = vmatprep.subr.mxu0 0.0
      %1020 = vmatpush1.msra.mxu0 0.0
      %1021 = vmatprep.subr.mxu0 0.0
      %1022 = vmatpush1.msra.mxu0 0.0
      %1023 = vmatprep.subr.mxu0 %v780
      %1024 = vmatpush1.msra.mxu0 %v779
      %1025 = vmatprep.subr.mxu0 %v778
      %1026 = vmatpush1.msra.mxu0 %v777
      %1027 = vmatprep.subr.mxu0 %v776
      %1028 = vmatpush1.msra.mxu0 %v775
      %1029 = vmatprep.subr.mxu0 %v774
      %1030 = vmatpush1.msra.mxu0 %v773
      %1031 = vmatprep.subr.mxu0 %v772
      %1032 = vmatpush1.msra.mxu0 %v771
      %1033 = vmatprep.subr.mxu0 %v770
      %1034 = vmatpush1.msra.mxu0 %v769
      %1035 = vmatprep.subr.mxu0 %v768
      %1036 = vmatpush1.msra.mxu0 %v767
      %1037 = vmatprep.subr.mxu0 %v766
      %1038 = vmatpush1.msra.mxu0 %v765
      %1039 = vmatprep.subr.mxu0 0.0
      %1040 = vmatpush2.msra.mxu0 0.0
      %1041 = vmatprep.subr.mxu0 0.0
      %1042 = vmatpush2.msra.mxu0 0.0
      %1043 = vmatprep.subr.mxu0 0.0
      %1044 = vmatpush2.msra.mxu0 0.0
      %1045 = vmatprep.subr.mxu0 0.0
      %1046 = vmatpush2.msra.mxu0 0.0
      %1047 = vmatprep.subr.mxu0 0.0
      %1048 = vmatpush2.msra.mxu0 0.0
      %1049 = vmatprep.subr.mxu0 0.0
      %1050 = vmatpush2.msra.mxu0 0.0
      %1051 = vmatprep.subr.mxu0 0.0
      %1052 = vmatpush2.msra.mxu0 0.0
      %1053 = vmatprep.subr.mxu0 0.0
      %1054 = vmatpush2.msra.mxu0 0.0
      %1055 = vmatprep.subr.mxu0 0.0
      %1056 = vmatpush2.msra.mxu0 0.0
      %1057 = vmatprep.subr.mxu0 0.0
      %1058 = vmatpush2.msra.mxu0 0.0
      %1059 = vmatprep.subr.mxu0 0.0
      %1060 = vmatpush2.msra.mxu0 0.0
      %1061 = vmatprep.subr.mxu0 0.0
      %1062 = vmatpush2.msra.mxu0 0.0
      %1063 = vmatprep.subr.mxu0 0.0
      %1064 = vmatpush2.msra.mxu0 0.0
      %1065 = vmatprep.subr.mxu0 0.0
      %1066 = vmatpush2.msra.mxu0 0.0
      %1067 = vmatprep.subr.mxu0 0.0
      %1068 = vmatpush2.msra.mxu0 0.0
      %1069 = vmatprep.subr.mxu0 0.0
      %1070 = vmatpush2.msra.mxu0 0.0
      %1071 = vmatprep.mubr.f32.mxu0 0.0
      %1072 = vmatmul.mubr.f32.gmra.mxu0 %v1005
      %v1073 = vpop.f32.mrf.mxu0
      %v1074 = vadd.f32 %v1001, %v1073
      %v1075 = vpop.f32.mrf.mxu0
      %v1076 = vadd.f32 %v1001, %v1075
      %1077 = vdwg.mxu0
      %v1080 = vcombine.low %v1074, %v1076
      %1082 = vst [vmem:[%s320] sm:$0xff] %v1080
      %s1083 = smul.u32 2, %s20
      %p1084 = scmp.lt.s32.totalorder %s1083, 3
      %s1085 = scalar_select %p1084, %s1083, 3
      %s1086 = smul.addr %s1085, 4
      %s1087 = scalar_lea.vmem %s6, %s1086
      %p1088 = scmp.lt.s32.totalorder %s20, 1
      %s1089 = scalar_select %p1088, %s20, 1
      %s1090 = scalar_lea.vmem %s7, %s1089
      %p1091 = scmp.lt.s32.totalorder %s20, 1
      %s1092 = scalar_select %p1091, %s20, 1
      %s1093 = smul.addr %s1092, 8
      %s1094 = smul.addr %s1093, 8
      %s1095 = scalar_lea.vmem %s8, %s1094
      // Predicated region
      $region45: #{vqvae_forward.1} parent=43 // pred_check
        %p1096 = pneg %p169
      $region46: #{vqvae_forward.1} parent=43 // pred_check_branch
        %1098 = sbr.rel (%p1096) target = $region48
      $region47: #{vqvae_forward.1} parent=43 // pred_region
        %s1099 = smul.u32 2, %s20
      $region48: #{vqvae_forward.1} parent=43 // pred_fallthru
        _
      // Predicated region
      $region49: #{vqvae_forward.1} parent=43 // pred_check
        %p1100 = pneg %p195
      $region50: #{vqvae_forward.1} parent=43 // pred_check_branch
        %1102 = sbr.rel (%p1100) target = $region52
      $region51: #{vqvae_forward.1} parent=43 // pred_region
        _
      $region52: #{vqvae_forward.1} parent=43 // pred_fallthru
        _
      // Predicated region
      $region53: #{vqvae_forward.1} parent=43 // pred_check
        %p1103 = pneg %p221
      $region54: #{vqvae_forward.1} parent=43 // pred_check_branch
        %1105 = sbr.rel (%p1103) target = $region56
      $region55: #{vqvae_forward.1} parent=43 // pred_region
        _
      $region56: #{vqvae_forward.1} parent=43 // pred_fallthru
        _
    $region44: #{vqvae_forward.1} parent=5 // pred_fallthru
      _
    %p1106 = scmp.le.s32.totalorder 2, %s15
    // Predicated region
    $region57: #{vqvae_forward.1} parent=5 // pred_check
      %p1107 = pneg %p1106
    $region58: #{vqvae_forward.1} parent=5 // pred_check_branch
      %1109 = sbr.rel (%p1107) target = $region60
    $region59: #{vqvae_forward.1} parent=5 // pred_region
      %s1110 = ssub.s32 %s15, 2
      // Predicated region
      $region61: #{vqvae_forward.1} parent=59 // pred_check
        %p1111 = pneg %p175
      $region62: #{vqvae_forward.1} parent=59 // pred_check_branch
        %1113 = sbr.rel (%p1111) target = $region64
      $region63: #{vqvae_forward.1} parent=59 // pred_region
        %s1114 = smul.u32 2, %s21
        %p1115 = scmp.lt.s32.totalorder %s1114, 3
        %s1116 = scalar_select %p1115, %s1114, 3
        %s1117 = smul.addr %s1116, 4
        %s1118 = scalar_lea.vmem %s6, %s1117
      $region64: #{vqvae_forward.1} parent=59 // pred_fallthru
        _
      // Predicated region
      $region65: #{vqvae_forward.1} parent=59 // pred_check
        %p1119 = pneg %p201
      $region66: #{vqvae_forward.1} parent=59 // pred_check_branch
        %1121 = sbr.rel (%p1119) target = $region68
      $region67: #{vqvae_forward.1} parent=59 // pred_region
        %p1122 = scmp.lt.s32.totalorder %s21, 1
        %s1123 = scalar_select %p1122, %s21, 1
        %s1124 = scalar_lea.vmem %s7, %s1123
      $region68: #{vqvae_forward.1} parent=59 // pred_fallthru
        _
      // Predicated region
      $region69: #{vqvae_forward.1} parent=59 // pred_check
        %p1125 = pneg %p227
      $region70: #{vqvae_forward.1} parent=59 // pred_check_branch
        %1127 = sbr.rel (%p1125) target = $region72
      $region71: #{vqvae_forward.1} parent=59 // pred_region
        %p1128 = scmp.lt.s32.totalorder %s21, 1
        %s1129 = scalar_select %p1128, %s21, 1
        %s1130 = smul.addr %s1129, 8
        %s1131 = smul.addr %s1130, 8
        %s1132 = scalar_lea.vmem %s8, %s1131
      $region72: #{vqvae_forward.1} parent=59 // pred_fallthru
        _
    $region60: #{vqvae_forward.1} parent=5 // pred_fallthru
      _
  $region6: #{vqvae_forward.1} parent=0 // loop_footer
    %s19 = sadd.s32 1, %s15
  $region7: #{vqvae_forward.1} parent=0 // loop_footer_branch
    %14 = sbr.rel target = $region3
  $region8: #{vqvae_forward.1} parent=0 // loop_exit
    _

</llo_original>
